<compile_context>
chip_gen: v6e
topology: v6e:2x2x1
jax: 0.10.0
libtpu: 0.0.40
codegen_flags: <defaults>
</compile_context>

<pallas_src>
import jax
import jax.numpy as jnp
from jax import lax
from jax.experimental import pallas as pl
from jax.experimental.pallas import tpu as pltpu

_LANE = 128
_PACK = 16                      # bf16 sublane packing granularity
_COMPUTE_DTYPE = jnp.bfloat16
_TILE_L_TARGET = 1024           # length tile (lanes), multiple of 128


def _round_up(x, m):
    return (x + m - 1) // m * m


def _downblock_kernel(y_ref, w_ref, b_ref, o_ref):
    # y_ref : (1, 1, Cin2p, S+2)  bf16 activation tile, 1-column conv halo baked in
    # w_ref : (3, Coutp, Cin2p)   bf16 weight, tap-major
    # b_ref : (Coutp, 1)          f32 bias
    # o_ref : (1, Coutp, S)       output tile
    S = o_ref.shape[2]
    y = y_ref[0, 0]                                     # (Cin2p, S+2)

    # Per-tap MXU matmuls with f32 accumulation.  Taps k=0,1,2 read the halo'd
    # tile at lane offsets 0/1/2 (cheap XLU lane shifts, no im2col buffer).
    acc = jnp.dot(w_ref[0], y[:, 0:S], preferred_element_type=jnp.float32)
    acc = acc + jnp.dot(w_ref[1], y[:, 1:S + 1], preferred_element_type=jnp.float32)
    acc = acc + jnp.dot(w_ref[2], y[:, 2:S + 2], preferred_element_type=jnp.float32)

    o_ref[0] = (acc + b_ref[...]).astype(o_ref.dtype)   # lane-dense (Coutp, S) store


@jax.jit
def down_block(x, weight, bias):
    """x: (B, C, L), L even. weight: (Cout, 2C, 3). bias: (Cout,). -> (B, Cout, L//2)."""
    B, C, L = x.shape
    assert L % 2 == 0, "DownBlock requires an even length"
    Lh = L // 2
    Cin2 = 2 * C
    Cout = weight.shape[0]

    Cin2p = _round_up(Cin2, _PACK)
    Coutp = _round_up(Cout, _PACK)

    # Length tiling: S = per-step output tile (multiple of 128); Lp = nT * S.
    if Lh <= _TILE_L_TARGET:
        S = _round_up(Lh, _LANE)
        Lp = S
    else:
        S = _TILE_L_TARGET
        Lp = _round_up(Lh, S)
    nT = Lp // S

    # einops 'b c (l p1) -> b (c p1) l' (p1=2) + channel pad + halo/length pad +
    # bf16 cast: one fused XLA pre-pass (no separate halo-pad pass).
    # TODO(synk): fold this de-interleave into the kernel to drop one HBM pass.
    y = x.reshape(B, C, Lh, 2).transpose(0, 1, 3, 2).reshape(B, Cin2, Lh)
    y = y.astype(_COMPUTE_DTYPE)
    # 1 zero column on the left (conv halo), Lp - Lh + 1 on the right (alignment
    # padding + conv halo).  Shape: (B, Cin2p, Lp + 2).
    y = jnp.pad(y, ((0, 0), (0, Cin2p - Cin2), (1, Lp - Lh + 1)))

    # Overlapping length tiles (each tile carries its own 1-column halo on both
    # sides) so every Pallas block is a plain aligned Blocked block.
    if nT == 1:
        y_t = y[:, None]                                           # (B, 1, Cin2p, S+2)
    else:
        y_t = jnp.stack([y[:, :, t * S: t * S + S + 2] for t in range(nT)],
                        axis=1)                                    # (B, nT, Cin2p, S+2)

    # Weight: (Cout, Cin2, 3) -> tap-major (3, Coutp, Cin2p), bf16.
    w_t = jnp.transpose(weight, (2, 0, 1))
    w_t = jnp.pad(w_t, ((0, 0), (0, Coutp - Cout), (0, Cin2p - Cin2)))
    w_t = w_t.astype(_COMPUTE_DTYPE)

    b2 = jnp.pad(bias.reshape(Cout, 1), ((0, Coutp - Cout), (0, 0))).astype(jnp.float32)

    out = pl.pallas_call(
        _downblock_kernel,
        out_shape=jax.ShapeDtypeStruct((B, Coutp, Lp), x.dtype),
        grid_spec=pltpu.PrefetchScalarGridSpec(
            num_scalar_prefetch=0,
            grid=(B, nT),
            in_specs=[
                pl.BlockSpec((1, 1, Cin2p, S + 2), lambda b, t: (b, t, 0, 0)),
                pl.BlockSpec((3, Coutp, Cin2p), lambda b, t: (0, 0, 0)),
                pl.BlockSpec((Coutp, 1), lambda b, t: (0, 0)),
            ],
            out_specs=pl.BlockSpec((1, Coutp, S), lambda b, t: (b, 0, t)),
        ),
        compiler_params=pltpu.CompilerParams(
            dimension_semantics=("parallel", "parallel"),
            vmem_limit_bytes=48 * 1024 * 1024,
        ),
    )(y_t, w_t, b2)

    if Coutp != Cout or Lp != Lh:
        out = out[:, :Cout, :Lh]
    return out


def _reference(x, weight, bias):
    B, C, L = x.shape
    Lh = L // 2
    y = x.reshape(B, C, Lh, 2).transpose(0, 1, 3, 2).reshape(B, 2 * C, Lh)
    out = lax.conv_general_dilated(
        y, weight, window_strides=(1,), padding=((1, 1),),
        dimension_numbers=("NCH", "OIH", "NCH"))
    return out + bias.reshape(1, -1, 1)


if __name__ == "__main__":
    B, C, L = 2, 4, 16          # input (B, C, L); L even
    Cout = 8                    # out_channels
    key = jax.random.PRNGKey(0)
    kx, kw, kb = jax.random.split(key, 3)

    x = jax.random.normal(kx, (B, C, L), dtype=jnp.float32)
    weight = jax.random.normal(kw, (Cout, 2 * C, 3), dtype=jnp.float32) * 0.1
    bias = jax.random.normal(kb, (Cout,), dtype=jnp.float32) * 0.1

    out = down_block(x, weight, bias)
    jax.block_until_ready(out)

    ref = _reference(x, weight, bias)
    assert out.shape == (B, Cout, L // 2)
    # bf16 MXU operands (f32 accumulate) -> relaxed tolerance vs f32 reference.
    assert jnp.allclose(out, ref, atol=2e-2, rtol=2e-2)

    # Exercise the multi-tile length path (nT > 1, halo across tile boundaries).
    L2 = 2 * (_TILE_L_TARGET + 640)      # Lh = 1664 -> S = 1024, nT = 2
    x2 = jax.random.normal(kx, (1, C, L2), dtype=jnp.float32)
    out2 = down_block(x2, weight, bias)
    jax.block_until_ready(out2)
    ref2 = _reference(x2, weight, bias)
    assert out2.shape == (1, Cout, L2 // 2)
    assert jnp.allclose(out2, ref2, atol=2e-2, rtol=2e-2)

    print("KERNEL_OK")
</pallas_src>

<mosaic_0001>
module attributes {stable_mosaic.version = 11 : i64} {
  func.func @_downblock_kernel(%arg0: i32, %arg1: i32, %arg2: memref<1x1x16x130xbf16, #tpu.memory_space<vmem>>, %arg3: memref<3x16x16xbf16, #tpu.memory_space<vmem>>, %arg4: memref<16x1xf32, #tpu.memory_space<vmem>>, %arg5: memref<1x16x128xf32, #tpu.memory_space<vmem>>) attributes {dimension_semantics = [#tpu.dimension_semantics<parallel>, #tpu.dimension_semantics<parallel>], iteration_bounds = array<i64: 2, 1>, scalar_prefetch = 0 : i64, scratch_operands = 0 : i64, tpu.core_type = #tpu.core_type<tc>, window_params = [{transform_indices = @transform_0, window_bounds = array<i64: 1, 1, 16, 130>}, {pipeline_mode = #tpu.pipeline_mode<synchronous>, transform_indices = @transform_1, window_bounds = array<i64: 3, 16, 16>}, {pipeline_mode = #tpu.pipeline_mode<synchronous>, transform_indices = @transform_2, window_bounds = array<i64: 16, 1>}, {transform_indices = @transform_3, window_bounds = array<i64: 1, 16, 128>}]} {
    %c0 = arith.constant 0 : index
    %c0_0 = arith.constant 0 : index
    %c0_1 = arith.constant 0 : index
    %c0_2 = arith.constant 0 : index
    %0 = vector.load %arg2[%c0, %c0_0, %c0_1, %c0_2] : memref<1x1x16x130xbf16, #tpu.memory_space<vmem>>, vector<1x1x16x130xbf16>
    %1 = vector.shape_cast %0 : vector<1x1x16x130xbf16> to vector<16x130xbf16>
    %c0_3 = arith.constant 0 : index
    %c0_4 = arith.constant 0 : index
    %c0_5 = arith.constant 0 : index
    %2 = vector.load %arg3[%c0_3, %c0_4, %c0_5] : memref<3x16x16xbf16, #tpu.memory_space<vmem>>, vector<1x16x16xbf16>
    %3 = vector.shape_cast %2 : vector<1x16x16xbf16> to vector<16x16xbf16>
    %4 = vector.extract_strided_slice %1 {offsets = [0, 0], sizes = [16, 128], strides = [1, 1]} : vector<16x130xbf16> to vector<16x128xbf16>
    %cst = arith.constant dense<0.000000e+00> : vector<16x128xf32>
    %5 = tpu.matmul %3, %4, %cst {dimension_numbers = #tpu.dot_dimension_numbers<[1], [0], [0], [1], [0, 0, 1, 1], [], []>} : vector<16x16xbf16>, vector<16x128xbf16>, vector<16x128xf32> -> vector<16x128xf32>
    %c1 = arith.constant 1 : index
    %c0_6 = arith.constant 0 : index
    %c0_7 = arith.constant 0 : index
    %6 = vector.load %arg3[%c1, %c0_6, %c0_7] : memref<3x16x16xbf16, #tpu.memory_space<vmem>>, vector<1x16x16xbf16>
    %7 = vector.shape_cast %6 : vector<1x16x16xbf16> to vector<16x16xbf16>
    %8 = vector.extract_strided_slice %1 {offsets = [0, 1], sizes = [16, 128], strides = [1, 1]} : vector<16x130xbf16> to vector<16x128xbf16>
    %cst_8 = arith.constant dense<0.000000e+00> : vector<16x128xf32>
    %9 = tpu.matmul %7, %8, %cst_8 {dimension_numbers = #tpu.dot_dimension_numbers<[1], [0], [0], [1], [0, 0, 1, 1], [], []>} : vector<16x16xbf16>, vector<16x128xbf16>, vector<16x128xf32> -> vector<16x128xf32>
    %10 = arith.addf %5, %9 : vector<16x128xf32>
    %c2 = arith.constant 2 : index
    %c0_9 = arith.constant 0 : index
    %c0_10 = arith.constant 0 : index
    %11 = vector.load %arg3[%c2, %c0_9, %c0_10] : memref<3x16x16xbf16, #tpu.memory_space<vmem>>, vector<1x16x16xbf16>
    %12 = vector.shape_cast %11 : vector<1x16x16xbf16> to vector<16x16xbf16>
    %13 = vector.extract_strided_slice %1 {offsets = [0, 2], sizes = [16, 128], strides = [1, 1]} : vector<16x130xbf16> to vector<16x128xbf16>
    %cst_11 = arith.constant dense<0.000000e+00> : vector<16x128xf32>
    %14 = tpu.matmul %12, %13, %cst_11 {dimension_numbers = #tpu.dot_dimension_numbers<[1], [0], [0], [1], [0, 0, 1, 1], [], []>} : vector<16x16xbf16>, vector<16x128xbf16>, vector<16x128xf32> -> vector<16x128xf32>
    %15 = arith.addf %10, %14 : vector<16x128xf32>
    %c0_12 = arith.constant 0 : index
    %c0_13 = arith.constant 0 : index
    %16 = vector.load %arg4[%c0_12, %c0_13] : memref<16x1xf32, #tpu.memory_space<vmem>>, vector<16x1xf32>
    %17 = vector.broadcast %16 : vector<16x1xf32> to vector<16x128xf32>
    %18 = arith.addf %15, %17 : vector<16x128xf32>
    %c0_14 = arith.constant 0 : index
    %c0_15 = arith.constant 0 : index
    %c0_16 = arith.constant 0 : index
    %19 = vector.load %arg5[%c0_14, %c0_15, %c0_16] : memref<1x16x128xf32, #tpu.memory_space<vmem>>, vector<1x16x128xf32>
    %20 = vector.shape_cast %19 : vector<1x16x128xf32> to vector<16x128xf32>
    %21 = vector.shape_cast %18 : vector<16x128xf32> to vector<1x16x128xf32>
    tpu.vector_store %arg5[%c0_14, %c0_15, %c0_16], %21 {strides = array<i32>} : memref<1x16x128xf32, #tpu.memory_space<vmem>>, vector<1x16x128xf32>,
    return
  }
  func.func @transform_0(%arg0: i32, %arg1: i32) -> (i32, i32, i32, i32) {
    %c0_i32 = arith.constant 0 : i32
    %c0_i32_0 = arith.constant 0 : i32
    %c0_i32_1 = arith.constant 0 : i32
    return %arg0, %arg1, %c0_i32, %c0_i32_0 : i32, i32, i32, i32
  }
  func.func @transform_1(%arg0: i32, %arg1: i32) -> (i32, i32, i32) {
    %c0_i32 = arith.constant 0 : i32
    %c0_i32_0 = arith.constant 0 : i32
    %c0_i32_1 = arith.constant 0 : i32
    %c0_i32_2 = arith.constant 0 : i32
    return %c0_i32, %c0_i32_0, %c0_i32_1 : i32, i32, i32
  }
  func.func @transform_2(%arg0: i32, %arg1: i32) -> (i32, i32) {
    %c0_i32 = arith.constant 0 : i32
    %c0_i32_0 = arith.constant 0 : i32
    %c0_i32_1 = arith.constant 0 : i32
    return %c0_i32, %c0_i32_0 : i32, i32
  }
  func.func @transform_3(%arg0: i32, %arg1: i32) -> (i32, i32, i32) {
    %c0_i32 = arith.constant 0 : i32
    %c0_i32_0 = arith.constant 0 : i32
    return %arg0, %c0_i32, %arg1 : i32, i32, i32
  }
}

</mosaic_0001>

<llo_original>
// kernel: down_block.1
$region0: #{down_block.1}
  #allocation0 [shape = 'u32[]', space=smem, size = 0x4, offset = 0x4, fixed_abs, tag = 'smem constant byte address 0x4 - core index']
  #allocation1 [shape = 'u32[144,128]{1,0:T(1,128)}', space=vmem, size = 0x12000, scoped, tag = 'internal scratch']
  %s0 = inlined_call_operand.vmem [shape: bf16[2,1,16,130], index: 0, kind: input, shape index: {}]
  %s1 = inlined_call_operand.vmem [shape: bf16[3,16,16], index: 1, kind: input, shape index: {}]
  %s2 = inlined_call_operand.vmem [shape: f32[16,1], index: 2, kind: input, shape index: {}]
  %s3 = inlined_call_operand.vmem [shape: f32[2,16,128], index: 3, kind: output, shape index: {}]
  %s4 = sld [smem:[#allocation0]]
  $region45: #{down_block.1} parent=0
    _
  %s6 = ssub.s32 1, %s4
  %s7 = scalar_select 0, %s6, %s4
  loop: start=0, step=1, limit=4
  $region2: #{down_block.1} parent=0 // loop_pre_header
    _
  $region3: #{down_block.1} parent=0 // loop_header
    %s9 = sphi 0, %s13
    %p10 = scmp.ge.s32.totalorder %s9, 4
    %s16 = sphi 0, %s28
    %s17 = sphi 0, %s24
    %s18 = sphi 0, %s16
    %s19 = sphi 0, %s17
    %s20 = sphi 0, %s18
    %s21 = sphi 0, %s19
    %s33 = sphi 0, %s35
    %s36 = sphi 0, %s33
    %s37 = sphi 0, %s36
    %s53 = sphi 0, %s37
    %s57 = sphi 0, %s57
    %s59 = sphi 0, %s57
    %s60 = sphi 0, %s59
    %s74 = sphi 0, %s60
    %s78 = sphi 0, %s78
    %s80 = sphi 0, %s78
    %s81 = sphi 0, %s80
    %s95 = sphi 0, %s81
    %s103 = sphi 0, %s105
    %s106 = sphi 0, %s103
    %s107 = sphi 0, %s106
    %s123 = sphi 0, %s107
  $region4: #{down_block.1} parent=0 // loop_header_branch
    %12 = sbr.rel (%p10) target = $region8
  $region5: #{down_block.1} parent=0 // loop_body
    %s14 = ssub.s32 %s9, 1
    %s15 = ssub.s32 %s9, 2
    %s22 = sadd.s32 1, %s17
    %p23 = scmp.ge.s32.totalorder %s22, 1
    %s24 = scalar_select %p23, 0, %s22
    %s25 = sadd.s32 1, %s16
    %s26 = scalar_select %p23, %s25, %s16
    %p27 = scmp.ge.s32.totalorder %s26, 2
    %s28 = scalar_select %p27, 0, %s26
    %s29 = ssub.s32 %s16, %s28
    %s30 = ssub.s32 %s17, %s24
    %s31 = sor.u32 %s29, %s30
    %p32 = scmp.eq.s32.totalorder %s31, 0
    %s34 = sadd.s32 %s33, 1
    %s35 = scalar_select %p32, %s33, %s34
    %p38 = pneg %p32
    %p39 = scmp.eq.s32.totalorder %s9, 1
    %p40 = por %p38, %p39
    %p41 = scmp.ne.s32.totalorder %s33, %s36
    %p42 = scmp.eq.s32.totalorder %s9, 0
    %p43 = por %p41, %p42
    %p44 = scmp.ne.s32.totalorder %s33, %s36
    %p45 = scmp.eq.s32.totalorder %s14, 1
    %p46 = por %p44, %p45
    %p47 = scmp.ne.s32.totalorder %s36, %s37
    %p48 = scmp.eq.s32.totalorder %s14, 0
    %p49 = por %p47, %p48
    %p50 = scmp.ne.s32.totalorder %s36, %s37
    %p51 = scmp.eq.s32.totalorder %s15, 1
    %p52 = por %p50, %p51
    %p54 = scmp.ne.s32.totalorder %s37, %s53
    %p55 = scmp.eq.s32.totalorder %s15, 0
    %p56 = por %p54, %p55
    %s58 = sadd.s32 %s57, 1
    %p61 = scmp.eq.s32.totalorder %s9, 1
    %p62 = scmp.ne.s32.totalorder %s57, %s59
    %p63 = scmp.eq.s32.totalorder %s9, 0
    %p64 = por %p62, %p63
    %p65 = scmp.ne.s32.totalorder %s57, %s59
    %p66 = scmp.eq.s32.totalorder %s14, 1
    %p67 = por %p65, %p66
    %p68 = scmp.ne.s32.totalorder %s59, %s60
    %p69 = scmp.eq.s32.totalorder %s14, 0
    %p70 = por %p68, %p69
    %p71 = scmp.ne.s32.totalorder %s59, %s60
    %p72 = scmp.eq.s32.totalorder %s15, 1
    %p73 = por %p71, %p72
    %p75 = scmp.ne.s32.totalorder %s60, %s74
    %p76 = scmp.eq.s32.totalorder %s15, 0
    %p77 = por %p75, %p76
    %s79 = sadd.s32 %s78, 1
    %p82 = scmp.eq.s32.totalorder %s9, 1
    %p83 = scmp.ne.s32.totalorder %s78, %s80
    %p84 = scmp.eq.s32.totalorder %s9, 0
    %p85 = por %p83, %p84
    %p86 = scmp.ne.s32.totalorder %s78, %s80
    %p87 = scmp.eq.s32.totalorder %s14, 1
    %p88 = por %p86, %p87
    %p89 = scmp.ne.s32.totalorder %s80, %s81
    %p90 = scmp.eq.s32.totalorder %s14, 0
    %p91 = por %p89, %p90
    %p92 = scmp.ne.s32.totalorder %s80, %s81
    %p93 = scmp.eq.s32.totalorder %s15, 1
    %p94 = por %p92, %p93
    %p96 = scmp.ne.s32.totalorder %s81, %s95
    %p97 = scmp.eq.s32.totalorder %s15, 0
    %p98 = por %p96, %p97
    %s99 = ssub.s32 %s16, %s28
    %s100 = ssub.s32 %s17, %s24
    %s101 = sor.u32 %s99, %s100
    %p102 = scmp.eq.s32.totalorder %s101, 0
    %s104 = sadd.s32 %s103, 1
    %s105 = scalar_select %p102, %s103, %s104
    %p108 = pneg %p102
    %p109 = scmp.eq.s32.totalorder %s9, 1
    %p110 = por %p108, %p109
    %p111 = scmp.ne.s32.totalorder %s103, %s106
    %p112 = scmp.eq.s32.totalorder %s9, 0
    %p113 = por %p111, %p112
    %p114 = scmp.ne.s32.totalorder %s103, %s106
    %p115 = scmp.eq.s32.totalorder %s14, 1
    %p116 = por %p114, %p115
    %p117 = scmp.ne.s32.totalorder %s106, %s107
    %p118 = scmp.eq.s32.totalorder %s14, 0
    %p119 = por %p117, %p118
    %p120 = scmp.ne.s32.totalorder %s106, %s107
    %p121 = scmp.eq.s32.totalorder %s15, 1
    %p122 = por %p120, %p121
    %p124 = scmp.ne.s32.totalorder %s107, %s123
    %p125 = scmp.eq.s32.totalorder %s15, 0
    %p126 = por %p124, %p125
    %p127 = scmp.le.s32.totalorder 1, %s9
    %p128 = scmp.lt.s32.totalorder %s9, 3
    %p129 = pnand %p127, %p128
    %p130 = pneg %p129
    // Predicated region
    $region9: #{down_block.1} parent=5 // pred_check
      _
    $region10: #{down_block.1} parent=5 // pred_check_branch
      %132 = sbr.rel (%p129) target = $region12
    $region11: #{down_block.1} parent=5 // pred_region
      %s133 = ssub.s32 %s9, 1
      // Predicated region
      $region13: #{down_block.1} parent=11 // pred_check
        %p134 = pneg %p70
      $region14: #{down_block.1} parent=11 // pred_check_branch
        %136 = sbr.rel (%p134) target = $region16
      $region15: #{down_block.1} parent=11 // pred_region
        _
      $region16: #{down_block.1} parent=11 // pred_fallthru
        _
      // Predicated region
      $region17: #{down_block.1} parent=11 // pred_check
        %p137 = pneg %p91
      $region18: #{down_block.1} parent=11 // pred_check_branch
        %139 = sbr.rel (%p137) target = $region20
      $region19: #{down_block.1} parent=11 // pred_region
        _
      $region20: #{down_block.1} parent=11 // pred_fallthru
        _
    $region12: #{down_block.1} parent=5 // pred_fallthru
      _
    %p140 = scmp.lt.s32.totalorder %s9, 2
    // Predicated region
    $region21: #{down_block.1} parent=5 // pred_check
      %p141 = pneg %p140
    $region22: #{down_block.1} parent=5 // pred_check_branch
      %143 = sbr.rel (%p141) target = $region24
    $region23: #{down_block.1} parent=5 // pred_region
      // Predicated region
      $region25: #{down_block.1} parent=23 // pred_check
        %p144 = pneg %p43
      $region26: #{down_block.1} parent=23 // pred_check_branch
        %146 = sbr.rel (%p144) target = $region28
      $region27: #{down_block.1} parent=23 // pred_region
        %p147 = scmp.lt.s32.totalorder %s16, 1
        %s148 = scalar_select %p147, %s16, 1
        %p149 = scmp.lt.s32.totalorder %s17, 0
        %s150 = scalar_select %p149, %s17, 0
        %s151 = smul.addr %s150, 4
        %s152 = smul.addr %s148, 4
        %s153 = sadd.s32 %s151, %s152
        %s154 = smul.addr %s153, 4
        %s155 = scalar_lea.vmem %s0, %s154
      $region28: #{down_block.1} parent=23 // pred_fallthru
        _
    $region24: #{down_block.1} parent=5 // pred_fallthru
      _
    %p156 = scmp.le.s32.totalorder 1, %s9
    %p157 = scmp.lt.s32.totalorder %s9, 3
    %p158 = pnand %p156, %p157
    %p159 = pneg %p158
    // Predicated region
    $region29: #{down_block.1} parent=5 // pred_check
      _
    $region30: #{down_block.1} parent=5 // pred_check_branch
      %161 = sbr.rel (%p158) target = $region32
    $region31: #{down_block.1} parent=5 // pred_region
      %s162 = ssub.s32 %s9, 1
      %p163 = scmp.lt.s32.totalorder %s18, 1
      %s164 = scalar_select %p163, %s18, 1
      %p165 = scmp.lt.s32.totalorder %s19, 0
      %s166 = scalar_select %p165, %s19, 0
      %s167 = smul.addr %s166, 4
      %s168 = smul.addr %s164, 4
      %s169 = sadd.s32 %s167, %s168
      %s170 = smul.addr %s169, 4
      %s171 = scalar_lea.vmem %s0, %s170
      %p172 = pneg %p49
      %p173 = pneg %p46
      %p174 = pneg %p70
      %p175 = pneg %p67
      %p176 = pneg %p91
      %p177 = pneg %p88
      %p178 = pneg %p119
      %p179 = pneg %p116
      %p180 = scmp.lt.s32.totalorder %s18, 1
      %s181 = scalar_select %p180, %s18, 1
      %p182 = scmp.lt.s32.totalorder %s19, 0
      %s183 = scalar_select %p182, %s19, 0
      %s184 = smul.addr %s181, 2
      %s185 = sadd.s32 %s183, %s184
      %s186 = smul.addr %s185, 8
      %s187 = scalar_lea.vmem %s3, %s186
      %p188 = scmp.lt.s32.totalorder %s18, 1
      %s189 = scalar_select %p188, %s18, 1
      %p190 = scmp.lt.s32.totalorder %s19, 0
      %s191 = scalar_select %p190, %s19, 0
      %s192 = smul.addr %s191, 4
      %s193 = smul.addr %s189, 4
      %s194 = sadd.s32 %s192, %s193
      %s195 = smul.addr %s194, 4
      %s196 = scalar_lea.vmem %s0, %s195
      %p197 = scmp.lt.s32.totalorder %s18, 1
      %s198 = scalar_select %p197, %s18, 1
      %p199 = scmp.lt.s32.totalorder %s19, 0
      %s200 = scalar_select %p199, %s19, 0
      %s201 = smul.addr %s198, 2
      %s202 = sadd.s32 %s200, %s201
      %s203 = smul.addr %s202, 8
      %s204 = scalar_lea.vmem %s3, %s203
      %v206 = vld [vmem:[%s196] sm:$0xff]
      %v207 = vld [vmem:[%s196 + $0x8] sm:$0xff]
      %v208 = vld [vmem:[%s1] sm:$0xf]
      %v209 = vld [vmem:[%s1 + $0x4] sm:$0xf]
      %s210 = scalar_lea.vmem %s1, 8
      %v211 = vld [vmem:[%s210] sm:$0xf]
      %v212 = vld [vmem:[%s210 + $0x4] sm:$0xf]
      %v215 = vunpack.c.l.b16 %v211
      %v216 = vunpack.c.l.b16 %v212
      %v217 = vpack.c.b16 %v216, %v215
      %v220 = vunpack.c.l.b16 %v206
      %v221 = vunpack.c.h.b16 %v206
      %v222 = vunpack.c.l.b16 %v207
      %v223 = vunpack.c.h.b16 %v207
      %v224 = vpack.c.b16 %v222, %v220
      %v225 = vpack.c.b16 %v223, %v221
      %226 = vrot.lane.b32.xlu0 %v224, 127
      %v227 = vpop.permute.xlu0 %226
      %228 = vrot.lane.b32.xlu0 %v225, 127
      %v229 = vpop.permute.xlu0 %228
      %vm230 = vcmask 1039360
      %v231 = vsel %vm230, %v227, %v229
      %vm233 = vcmask 130048
      %v235 = vsel %vm233, %v217, 0
      %237 = vmatprep.subr.bf16.mxu0 0
      %238 = vmatpush1.bf16.msra.mxu0 0
      %239 = vmatprep.subr.bf16.mxu0 0
      %240 = vmatpush1.bf16.msra.mxu0 0
      %241 = vmatprep.subr.bf16.mxu0 0
      %242 = vmatpush1.bf16.msra.mxu0 0
      %243 = vmatprep.subr.bf16.mxu0 0
      %244 = vmatpush1.bf16.msra.mxu0 0
      %245 = vmatprep.subr.bf16.mxu0 0
      %246 = vmatpush1.bf16.msra.mxu0 0
      %247 = vmatprep.subr.bf16.mxu0 0
      %248 = vmatpush1.bf16.msra.mxu0 0
      %249 = vmatprep.subr.bf16.mxu0 0
      %250 = vmatpush1.bf16.msra.mxu0 0
      %251 = vmatprep.subr.bf16.mxu0 0
      %252 = vmatpush1.bf16.msra.mxu0 %v231
      %253 = vmatprep.subr.bf16.mxu0 0
      %254 = vmatpush2.bf16.msra.mxu0 0
      %255 = vmatprep.subr.bf16.mxu0 0
      %256 = vmatpush2.bf16.msra.mxu0 0
      %257 = vmatprep.subr.bf16.mxu0 0
      %258 = vmatpush2.bf16.msra.mxu0 0
      %259 = vmatprep.subr.bf16.mxu0 0
      %260 = vmatpush2.bf16.msra.mxu0 0
      %261 = vmatprep.subr.bf16.mxu0 0
      %262 = vmatpush2.bf16.msra.mxu0 0
      %263 = vmatprep.subr.bf16.mxu0 0
      %264 = vmatpush2.bf16.msra.mxu0 0
      %265 = vmatprep.subr.bf16.mxu0 0
      %266 = vmatpush2.bf16.msra.mxu0 0
      %267 = vmatprep.subr.bf16.mxu0 0
      %268 = vmatpush2.bf16.msra.mxu0 0
      %269 = vmatprep.mubr.bf16.mxu0 0
      %270 = vmatmul.mubr.bf16.gmra.mxu0 %v235
      %v271 = vpop.f32.mrf.mxu0
      %v272 = vadd.f32 0.0, %v271
      %v273 = vpop.f32.mrf.mxu0
      %v274 = vpop.f32.mrf.mxu0
      %v275 = vadd.f32 0.0, %v274
      %v276 = vpop.f32.mrf.mxu0
      %277 = vdwg.mxu0
      %v280 = vunpack.c.l.b16 %v208
      %v281 = vunpack.c.l.b16 %v209
      %v282 = vpack.c.b16 %v281, %v280
      %v285 = vsel %vm233, %v282, 0
      %287 = vmatprep.subr.bf16.mxu0 0
      %288 = vmatpush1.bf16.msra.mxu0 0
      %289 = vmatprep.subr.bf16.mxu0 0
      %290 = vmatpush1.bf16.msra.mxu0 0
      %291 = vmatprep.subr.bf16.mxu0 0
      %292 = vmatpush1.bf16.msra.mxu0 0
      %293 = vmatprep.subr.bf16.mxu0 0
      %294 = vmatpush1.bf16.msra.mxu0 0
      %295 = vmatprep.subr.bf16.mxu0 0
      %296 = vmatpush1.bf16.msra.mxu0 0
      %297 = vmatprep.subr.bf16.mxu0 0
      %298 = vmatpush1.bf16.msra.mxu0 0
      %299 = vmatprep.subr.bf16.mxu0 0
      %300 = vmatpush1.bf16.msra.mxu0 0
      %301 = vmatprep.subr.bf16.mxu0 0
      %302 = vmatpush1.bf16.msra.mxu0 %v224
      %303 = vmatprep.subr.bf16.mxu0 0
      %304 = vmatpush2.bf16.msra.mxu0 0
      %305 = vmatprep.subr.bf16.mxu0 0
      %306 = vmatpush2.bf16.msra.mxu0 0
      %307 = vmatprep.subr.bf16.mxu0 0
      %308 = vmatpush2.bf16.msra.mxu0 0
      %309 = vmatprep.subr.bf16.mxu0 0
      %310 = vmatpush2.bf16.msra.mxu0 0
      %311 = vmatprep.subr.bf16.mxu0 0
      %312 = vmatpush2.bf16.msra.mxu0 0
      %313 = vmatprep.subr.bf16.mxu0 0
      %314 = vmatpush2.bf16.msra.mxu0 0
      %315 = vmatprep.subr.bf16.mxu0 0
      %316 = vmatpush2.bf16.msra.mxu0 0
      %317 = vmatprep.subr.bf16.mxu0 0
      %318 = vmatpush2.bf16.msra.mxu0 0
      %319 = vmatprep.mubr.bf16.mxu0 0
      %320 = vmatmul.mubr.bf16.gmra.mxu0 %v285
      %v321 = vpop.f32.mrf.mxu0
      %v322 = vadd.f32 %v272, %v321
      %v323 = vpop.f32.mrf.mxu0
      %v324 = vpop.f32.mrf.mxu0
      %v325 = vadd.f32 %v275, %v324
      %v326 = vpop.f32.mrf.mxu0
      %327 = vdwg.mxu0
      %s328 = scalar_lea.vmem %s1, 16
      %v329 = vld [vmem:[%s328] sm:$0xf]
      %v330 = vld [vmem:[%s328 + $0x4] sm:$0xf]
      %v333 = vunpack.c.l.b16 %v329
      %v334 = vunpack.c.l.b16 %v330
      %v335 = vpack.c.b16 %v334, %v333
      %336 = vrot.lane.b32.xlu0 %v224, 126
      %v337 = vpop.permute.xlu0 %336
      %338 = vrot.lane.b32.xlu0 %v225, 126
      %v339 = vpop.permute.xlu0 %338
      %vm340 = vcmask 1031168
      %v341 = vsel %vm340, %v337, %v339
      %v344 = vsel %vm233, %v335, 0
      %346 = vmatprep.subr.bf16.mxu0 0
      %347 = vmatpush1.bf16.msra.mxu0 0
      %348 = vmatprep.subr.bf16.mxu0 0
      %349 = vmatpush1.bf16.msra.mxu0 0
      %350 = vmatprep.subr.bf16.mxu0 0
      %351 = vmatpush1.bf16.msra.mxu0 0
      %352 = vmatprep.subr.bf16.mxu0 0
      %353 = vmatpush1.bf16.msra.mxu0 0
      %354 = vmatprep.subr.bf16.mxu0 0
      %355 = vmatpush1.bf16.msra.mxu0 0
      %356 = vmatprep.subr.bf16.mxu0 0
      %357 = vmatpush1.bf16.msra.mxu0 0
      %358 = vmatprep.subr.bf16.mxu0 0
      %359 = vmatpush1.bf16.msra.mxu0 0
      %360 = vmatprep.subr.bf16.mxu0 0
      %361 = vmatpush1.bf16.msra.mxu0 %v341
      %362 = vmatprep.subr.bf16.mxu0 0
      %363 = vmatpush2.bf16.msra.mxu0 0
      %364 = vmatprep.subr.bf16.mxu0 0
      %365 = vmatpush2.bf16.msra.mxu0 0
      %366 = vmatprep.subr.bf16.mxu0 0
      %367 = vmatpush2.bf16.msra.mxu0 0
      %368 = vmatprep.subr.bf16.mxu0 0
      %369 = vmatpush2.bf16.msra.mxu0 0
      %370 = vmatprep.subr.bf16.mxu0 0
      %371 = vmatpush2.bf16.msra.mxu0 0
      %372 = vmatprep.subr.bf16.mxu0 0
      %373 = vmatpush2.bf16.msra.mxu0 0
      %374 = vmatprep.subr.bf16.mxu0 0
      %375 = vmatpush2.bf16.msra.mxu0 0
      %376 = vmatprep.subr.bf16.mxu0 0
      %377 = vmatpush2.bf16.msra.mxu0 0
      %378 = vmatprep.mubr.bf16.mxu0 0
      %379 = vmatmul.mubr.bf16.gmra.mxu0 %v344
      %v380 = vpop.f32.mrf.mxu0
      %v381 = vadd.f32 0.0, %v380
      %v382 = vpop.f32.mrf.mxu0
      %v383 = vpop.f32.mrf.mxu0
      %v384 = vadd.f32 0.0, %v383
      %v385 = vpop.f32.mrf.mxu0
      %386 = vdwg.mxu0
      %v387 = vadd.f32 %v322, %v381
      %v388 = vadd.f32 %v325, %v384
      %v389 = vld [vmem:[%s2] sm:$0xff]
      %v390 = vld [vmem:[%s2 + $0x8] sm:$0xff]
      %392 = vset.pattern.permute.xlu0 0
      %393 = vperm.xlu0 %392, %v389
      %v394 = vpop.permute.xlu0 %393
      %397 = vset.pattern.permute.xlu0 0
      %398 = vperm.xlu0 %397, %v390
      %v399 = vpop.permute.xlu0 %398
      %v401 = vadd.f32 %v387, %v394
      %v402 = vadd.f32 %v388, %v399
      %403 = vst [vmem:[%s204] sm:$0xff] %v401
      %404 = vst [vmem:[%s204 + $0x8] sm:$0xff] %v402
      %p405 = scmp.lt.s32.totalorder %s18, 1
      %s406 = scalar_select %p405, %s18, 1
      %p407 = scmp.lt.s32.totalorder %s19, 0
      %s408 = scalar_select %p407, %s19, 0
      %s409 = smul.addr %s406, 2
      %s410 = sadd.s32 %s408, %s409
      %s411 = smul.addr %s410, 8
      %s412 = scalar_lea.vmem %s3, %s411
      // Predicated region
      $region33: #{down_block.1} parent=31 // pred_check
        %p413 = pneg %p116
      $region34: #{down_block.1} parent=31 // pred_check_branch
        %415 = sbr.rel (%p413) target = $region36
      $region35: #{down_block.1} parent=31 // pred_region
        _
      $region36: #{down_block.1} parent=31 // pred_fallthru
        _
    $region32: #{down_block.1} parent=5 // pred_fallthru
      _
    %p416 = scmp.le.s32.totalorder 2, %s9
    // Predicated region
    $region37: #{down_block.1} parent=5 // pred_check
      %p417 = pneg %p416
    $region38: #{down_block.1} parent=5 // pred_check_branch
      %419 = sbr.rel (%p417) target = $region40
    $region39: #{down_block.1} parent=5 // pred_region
      %s420 = ssub.s32 %s9, 2
      // Predicated region
      $region41: #{down_block.1} parent=39 // pred_check
        %p421 = pneg %p122
      $region42: #{down_block.1} parent=39 // pred_check_branch
        %423 = sbr.rel (%p421) target = $region44
      $region43: #{down_block.1} parent=39 // pred_region
        %p424 = scmp.lt.s32.totalorder %s20, 1
        %s425 = scalar_select %p424, %s20, 1
        %p426 = scmp.lt.s32.totalorder %s21, 0
        %s427 = scalar_select %p426, %s21, 0
        %s428 = smul.addr %s425, 2
        %s429 = sadd.s32 %s427, %s428
        %s430 = smul.addr %s429, 8
        %s431 = scalar_lea.vmem %s3, %s430
      $region44: #{down_block.1} parent=39 // pred_fallthru
        _
    $region40: #{down_block.1} parent=5 // pred_fallthru
      _
  $region6: #{down_block.1} parent=0 // loop_footer
    %s13 = sadd.s32 1, %s9
  $region7: #{down_block.1} parent=0 // loop_footer_branch
    %8 = sbr.rel target = $region3
  $region8: #{down_block.1} parent=0 // loop_exit
    _

</llo_original>
